<compile_context>
chip_gen: v7x
topology: tpu7x:2x2x1
jax: 0.10.0
libtpu: 0.0.40
codegen_flags: <defaults>
</compile_context>

<pallas_src>
import functools

import jax
import jax.numpy as jnp
from jax import lax
from jax.experimental import pallas as pl
from jax.experimental.pallas import tpu as pltpu


def _round_up(x, m):
    return (x + m - 1) // m * m


def _flash_sdpa_kernel(q_ref, k_ref, v_ref, o_ref, m_ref, l_ref, acc_ref, *,
                       scale, kv_len, tk, mask_kv):
    """One grid step: one (batch-block, q-tile, kv-tile) online-softmax update.

    q_ref: (b_blk, tq, Dp)   k_ref/v_ref: (b_blk, tk, Dp)   o_ref: (b_blk, tq, Dp)
    m_ref/l_ref: (b_blk, tq, 1) f32 scratch   acc_ref: (b_blk, tq, Dp) f32 scratch
    """
    j = pl.program_id(2)

    @pl.when(j == 0)
    def _init():
        m_ref[...] = jnp.full_like(m_ref, -1e30)
        l_ref[...] = jnp.zeros_like(l_ref)
        acc_ref[...] = jnp.zeros_like(acc_ref)

    # bf16 MXU operands with f32 accumulation: f32 matmuls take the slow
    # multi-pass MXU path on every generation.  Narrow inputs pass through.
    mxu_dtype = jnp.bfloat16 if q_ref.dtype == jnp.float32 else q_ref.dtype
    q = q_ref[...].astype(mxu_dtype)
    k = k_ref[...].astype(mxu_dtype)

    # Q @ K^T, contracting D, batched over the batch block.  The 1/sqrt(D)
    # scale is applied to the f32 scores (matches the reference's f32 scaling).
    s = jnp.einsum("bqd,bkd->bqk", q, k,
                   preferred_element_type=jnp.float32) * scale

    if mask_kv:  # static: kv padding present -> mask padded key positions
        key_idx = j * tk + lax.broadcasted_iota(jnp.int32, s.shape, 2)
        s = jnp.where(key_idx < kv_len, s, -1e30)

    m_prev = m_ref[...]
    m_new = jnp.maximum(m_prev, jnp.max(s, axis=-1, keepdims=True))
    alpha = jnp.exp(m_prev - m_new)
    p = jnp.exp(s - m_new)

    l_ref[...] = alpha * l_ref[...] + jnp.sum(p, axis=-1, keepdims=True)
    acc_ref[...] = alpha * acc_ref[...] + jnp.einsum(
        "bqk,bkd->bqd", p.astype(mxu_dtype), v_ref[...].astype(mxu_dtype),
        preferred_element_type=jnp.float32)
    m_ref[...] = m_new

    # TODO(synk): torch.nn.Dropout(p=1) would zero the output in train mode;
    # only the eval/inference (identity-dropout) path is implemented here.

    @pl.when(j == pl.num_programs(2) - 1)
    def _finalize():
        o_ref[...] = (acc_ref[...] / l_ref[...]).astype(o_ref.dtype)


def _vmem_limit_bytes():
    """Generation-aware scoped-VMEM limit (~3/4 of physical VMEM)."""
    cap = 64 * 1024 * 1024  # conservative fallback (v7x per-core VMEM)
    try:
        info = pltpu.get_tpu_info()
        cap = int(getattr(info, "vmem_capacity_bytes", cap) or cap)
    except Exception:
        pass
    return (cap * 3) // 4


def _pick_batch_block(B, tq, tk, Dp, itemsize, budget):
    """Largest batch block whose per-step working set fits in `budget`,
    counting Pallas's double buffering of every streamed BlockSpec operand."""
    per_batch = (
        2 * tq * Dp * itemsize          # q tile, double-buffered
        + 2 * 2 * tk * Dp * itemsize    # k and v tiles, double-buffered
        + 2 * tq * Dp * itemsize        # out tile, double-buffered
        + (tq * Dp + 2 * tq) * 4        # acc + m + l scratch (f32)
        + 2 * tq * tk * 4               # s / p intermediates (f32)
    )
    return max(1, min(B, budget // max(per_batch, 1)))


def scaled_dot_product_attention(query, key, value, mask=None):
    """Pallas TPU forward of ScaledDotProductAttention.

    query: (B, Lq, D), key/value: (B, Lk, D)  ->  (B, Lq, D)
    `mask` is accepted for signature parity; the reference forward ignores it.
    """
    del mask
    B, Lq, D = query.shape
    _, Lk, _ = key.shape
    out_dtype = query.dtype
    scale = float(D) ** -0.5  # from the *unpadded* head dim

    # Tile sizes (lane-dense / sublane-aligned); tiny shapes collapse to 1 tile.
    tq = min(128, _round_up(Lq, 8))
    tk = min(256, _round_up(Lk, 8))
    Dp = _round_up(D, 128)
    Lqp = _round_up(Lq, tq)
    Lkp = _round_up(Lk, tk)

    vmem_limit = _vmem_limit_bytes()
    b_blk = _pick_batch_block(B, tq, tk, Dp, jnp.dtype(out_dtype).itemsize,
                              budget=vmem_limit // 2)
    Bp = _round_up(B, b_blk)

    # Zero padding: padded q rows / batches produce rows we slice off, padded D
    # columns contribute zero to every contraction, padded keys are masked to
    # -1e30 inside the kernel before the softmax.
    q = jnp.pad(query, ((0, Bp - B), (0, Lqp - Lq), (0, Dp - D)))
    k = jnp.pad(key, ((0, Bp - B), (0, Lkp - Lk), (0, Dp - D)))
    v = jnp.pad(value, ((0, Bp - B), (0, Lkp - Lk), (0, Dp - D)))

    grid = (Bp // b_blk, Lqp // tq, Lkp // tk)
    kernel = functools.partial(_flash_sdpa_kernel, scale=scale, kv_len=Lk,
                               tk=tk, mask_kv=(Lkp != Lk))
    # Note: on v5e, if profiling shows exposed K/V DMA, the K/V specs below can
    # take pipeline_mode=pl.Buffered(3) for deeper prefetch along the kv axis.

    out = pl.pallas_call(
        kernel,
        out_shape=jax.ShapeDtypeStruct((Bp, Lqp, Dp), out_dtype),
        grid_spec=pltpu.PrefetchScalarGridSpec(
            num_scalar_prefetch=0,
            grid=grid,
            in_specs=[
                pl.BlockSpec((b_blk, tq, Dp), lambda b, i, j: (b, i, 0)),
                # K/V index maps are invariant in the q-tile axis.
                pl.BlockSpec((b_blk, tk, Dp), lambda b, i, j: (b, j, 0)),
                pl.BlockSpec((b_blk, tk, Dp), lambda b, i, j: (b, j, 0)),
            ],
            out_specs=pl.BlockSpec((b_blk, tq, Dp), lambda b, i, j: (b, i, 0)),
            scratch_shapes=[
                pltpu.VMEM((b_blk, tq, 1), jnp.float32),   # running max m
                pltpu.VMEM((b_blk, tq, 1), jnp.float32),   # running sum l
                pltpu.VMEM((b_blk, tq, Dp), jnp.float32),  # output accumulator
            ],
        ),
        compiler_params=pltpu.CompilerParams(
            # batch and q-tile axes are independent (megacore-shardable);
            # the kv axis carries the online-softmax reduction.
            dimension_semantics=("parallel", "parallel", "arbitrary"),
            vmem_limit_bytes=vmem_limit,
        ),
    )(q, k, v)

    return out[:B, :Lq, :D]


def _reference(query, key, value):
    scale = key.shape[-1] ** (-0.5)
    s = jnp.einsum("bqd,bkd->bqk", query, key) * scale
    p = jax.nn.softmax(s, axis=-1)
    return jnp.einsum("bqk,bkd->bqd", p, value)


if __name__ == "__main__":
    # bf16 MXU operands (with f32 accumulation) -> small relative error vs the
    # exact-f32 reference; tolerance loosened accordingly.
    tol = dict(atol=3e-2, rtol=3e-2)

    # Shapes from the reference module: query (1,1,64), key/value (1,10,64).
    kq, kk, kv = jax.random.split(jax.random.PRNGKey(0), 3)
    query = jax.random.normal(kq, (1, 1, 64), dtype=jnp.float32)
    key = jax.random.normal(kk, (1, 10, 64), dtype=jnp.float32)
    value = jax.random.normal(kv, (1, 10, 64), dtype=jnp.float32)
    out = jax.block_until_ready(
        scaled_dot_product_attention(query, key, value, mask=None))
    assert out.shape == (1, 1, 64)
    assert jnp.allclose(out, _reference(query, key, value), **tol)

    # Batched path (several batches folded into one grid step).
    kq2, kk2, kv2 = jax.random.split(jax.random.PRNGKey(1), 3)
    q2 = jax.random.normal(kq2, (4, 8, 64), dtype=jnp.float32)
    k2 = jax.random.normal(kk2, (4, 16, 64), dtype=jnp.float32)
    v2 = jax.random.normal(kv2, (4, 16, 64), dtype=jnp.float32)
    out2 = jax.block_until_ready(scaled_dot_product_attention(q2, k2, v2))
    assert jnp.allclose(out2, _reference(q2, k2, v2), **tol)

    # Multi-tile flash path: several q tiles and kv tiles + masked kv padding.
    kq3, kk3, kv3 = jax.random.split(jax.random.PRNGKey(2), 3)
    q3 = jax.random.normal(kq3, (2, 256, 64), dtype=jnp.float32)
    k3 = jax.random.normal(kk3, (2, 384, 64), dtype=jnp.float32)
    v3 = jax.random.normal(kv3, (2, 384, 64), dtype=jnp.float32)
    out3 = jax.block_until_ready(scaled_dot_product_attention(q3, k3, v3))
    assert jnp.allclose(out3, _reference(q3, k3, v3), **tol)

    print("KERNEL_OK")
</pallas_src>

<mosaic_0001>
module attributes {stable_mosaic.version = 11 : i64} {
  func.func @_flash_sdpa_kernel(%arg0: i32, %arg1: i32, %arg2: i32, %arg3: memref<1x8x128xf32, #tpu.memory_space<vmem>>, %arg4: memref<1x16x128xf32, #tpu.memory_space<vmem>>, %arg5: memref<1x16x128xf32, #tpu.memory_space<vmem>>, %arg6: memref<1x8x128xf32, #tpu.memory_space<vmem>>, %arg7: memref<1x8x1xf32, #tpu.memory_space<vmem>>, %arg8: memref<1x8x1xf32, #tpu.memory_space<vmem>>, %arg9: memref<1x8x128xf32, #tpu.memory_space<vmem>>) attributes {dimension_semantics = [#tpu.dimension_semantics<parallel>, #tpu.dimension_semantics<parallel>, #tpu.dimension_semantics<arbitrary>], iteration_bounds = array<i64: 1, 1, 1>, scalar_prefetch = 0 : i64, scratch_operands = 3 : i64, tpu.core_type = #tpu.core_type<tc>, window_params = [{transform_indices = @transform_0, window_bounds = array<i64: 1, 8, 128>}, {transform_indices = @transform_1, window_bounds = array<i64: 1, 16, 128>}, {transform_indices = @transform_2, window_bounds = array<i64: 1, 16, 128>}, {transform_indices = @transform_3, window_bounds = array<i64: 1, 8, 128>}]} {
    %c0_i32 = arith.constant 0 : i32
    %0 = arith.cmpi eq, %arg2, %c0_i32 : i32
    %1 = arith.extui %0 : i1 to i32
    %c0_i32_0 = arith.constant 0 : i32
    %2 = arith.cmpi ne, %1, %c0_i32_0 : i32
    scf.if %2 {
      %cst_34 = arith.constant -1.000000e+30 : f32
      %46 = vector.broadcast %cst_34 : f32 to vector<1x8x1xf32>
      %c0_35 = arith.constant 0 : index
      %c0_36 = arith.constant 0 : index
      %c0_37 = arith.constant 0 : index
      %47 = vector.load %arg7[%c0_35, %c0_36, %c0_37] : memref<1x8x1xf32, #tpu.memory_space<vmem>>, vector<1x8x1xf32>
      tpu.vector_store %arg7[%c0_35, %c0_36, %c0_37], %46 {strides = array<i32>} : memref<1x8x1xf32, #tpu.memory_space<vmem>>, vector<1x8x1xf32>,
      %cst_38 = arith.constant 0.000000e+00 : f32
      %48 = vector.broadcast %cst_38 : f32 to vector<1x8x1xf32>
      %c0_39 = arith.constant 0 : index
      %c0_40 = arith.constant 0 : index
      %c0_41 = arith.constant 0 : index
      %49 = vector.load %arg8[%c0_39, %c0_40, %c0_41] : memref<1x8x1xf32, #tpu.memory_space<vmem>>, vector<1x8x1xf32>
      tpu.vector_store %arg8[%c0_39, %c0_40, %c0_41], %48 {strides = array<i32>} : memref<1x8x1xf32, #tpu.memory_space<vmem>>, vector<1x8x1xf32>,
      %cst_42 = arith.constant 0.000000e+00 : f32
      %50 = vector.broadcast %cst_42 : f32 to vector<1x8x128xf32>
      %c0_43 = arith.constant 0 : index
      %c0_44 = arith.constant 0 : index
      %c0_45 = arith.constant 0 : index
      %51 = vector.load %arg9[%c0_43, %c0_44, %c0_45] : memref<1x8x128xf32, #tpu.memory_space<vmem>>, vector<1x8x128xf32>
      tpu.vector_store %arg9[%c0_43, %c0_44, %c0_45], %50 {strides = array<i32>} : memref<1x8x128xf32, #tpu.memory_space<vmem>>, vector<1x8x128xf32>,
    } else {
    }
    %c0 = arith.constant 0 : index
    %c0_1 = arith.constant 0 : index
    %c0_2 = arith.constant 0 : index
    %3 = vector.load %arg3[%c0, %c0_1, %c0_2] : memref<1x8x128xf32, #tpu.memory_space<vmem>>, vector<1x8x128xf32>
    %4 = arith.truncf %3 : vector<1x8x128xf32> to vector<1x8x128xbf16>
    %c0_3 = arith.constant 0 : index
    %c0_4 = arith.constant 0 : index
    %c0_5 = arith.constant 0 : index
    %5 = vector.load %arg4[%c0_3, %c0_4, %c0_5] : memref<1x16x128xf32, #tpu.memory_space<vmem>>, vector<1x16x128xf32>
    %6 = arith.truncf %5 : vector<1x16x128xf32> to vector<1x16x128xbf16>
    "tpu.trace_start"() <{level = 10 : i32, message = "bqd,bkd->bqk"}> : () -> ()
    %cst = arith.constant dense<0.000000e+00> : vector<1x8x16xf32>
    %7 = tpu.matmul %4, %6, %cst {dimension_numbers = #tpu.dot_dimension_numbers<[2], [2], [1], [1], [0, 0, 0, 1, 1, 1], [0], [0]>} : vector<1x8x128xbf16>, vector<1x16x128xbf16>, vector<1x8x16xf32> -> vector<1x8x16xf32>
    "tpu.trace_stop"() : () -> ()
    %cst_6 = arith.constant 1.250000e-01 : f32
    %8 = vector.broadcast %cst_6 : f32 to vector<1x8x16xf32>
    %9 = arith.mulf %7, %8 : vector<1x8x16xf32>
    %c16_i32 = arith.constant 16 : i32
    %10 = arith.muli %arg2, %c16_i32 : i32
    %11 = tpu.iota {dimensions = array<i32: 2>} : vector<1x8x16xi32>
    %12 = vector.broadcast %10 : i32 to vector<1x8x16xi32>
    %13 = arith.addi %12, %11 : vector<1x8x16xi32>
    %c10_i32 = arith.constant 10 : i32
    %14 = vector.broadcast %c10_i32 : i32 to vector<1x8x16xi32>
    %15 = arith.cmpi slt, %13, %14 : vector<1x8x16xi32>
    %cst_7 = arith.constant -1.000000e+30 : f32
    %16 = vector.broadcast %cst_7 : f32 to vector<1x8x16xf32>
    %17 = arith.select %15, %9, %16 : vector<1x8x16xi1>, vector<1x8x16xf32>
    %c0_8 = arith.constant 0 : index
    %c0_9 = arith.constant 0 : index
    %c0_10 = arith.constant 0 : index
    %18 = vector.load %arg7[%c0_8, %c0_9, %c0_10] : memref<1x8x1xf32, #tpu.memory_space<vmem>>, vector<1x8x1xf32>
    %cst_11 = arith.constant dense<0xFF800000> : vector<1x8xf32>
    %19 = vector.multi_reduction <maximumf>, %17, %cst_11 [2] : vector<1x8x16xf32> to vector<1x8xf32>
    %20 = vector.shape_cast %19 : vector<1x8xf32> to vector<1x8x1xf32>
    %21 = arith.maximumf %18, %20 : vector<1x8x1xf32>
    %22 = arith.subf %18, %21 : vector<1x8x1xf32>
    %23 = math.exp %22 : vector<1x8x1xf32>
    %24 = vector.broadcast %21 : vector<1x8x1xf32> to vector<1x8x16xf32>
    %25 = arith.subf %17, %24 : vector<1x8x16xf32>
    %26 = math.exp %25 : vector<1x8x16xf32>
    %c0_12 = arith.constant 0 : index
    %c0_13 = arith.constant 0 : index
    %c0_14 = arith.constant 0 : index
    %27 = vector.load %arg8[%c0_12, %c0_13, %c0_14] : memref<1x8x1xf32, #tpu.memory_space<vmem>>, vector<1x8x1xf32>
    %28 = arith.mulf %23, %27 : vector<1x8x1xf32>
    %cst_15 = arith.constant dense<0.000000e+00> : vector<1x8xf32>
    %29 = vector.multi_reduction <add>, %26, %cst_15 [2] : vector<1x8x16xf32> to vector<1x8xf32>
    %30 = vector.shape_cast %29 : vector<1x8xf32> to vector<1x8x1xf32>
    %31 = arith.addf %28, %30 : vector<1x8x1xf32>
    %c0_16 = arith.constant 0 : index
    %c0_17 = arith.constant 0 : index
    %c0_18 = arith.constant 0 : index
    %32 = vector.load %arg8[%c0_16, %c0_17, %c0_18] : memref<1x8x1xf32, #tpu.memory_space<vmem>>, vector<1x8x1xf32>
    tpu.vector_store %arg8[%c0_16, %c0_17, %c0_18], %31 {strides = array<i32>} : memref<1x8x1xf32, #tpu.memory_space<vmem>>, vector<1x8x1xf32>,
    %c0_19 = arith.constant 0 : index
    %c0_20 = arith.constant 0 : index
    %c0_21 = arith.constant 0 : index
    %33 = vector.load %arg9[%c0_19, %c0_20, %c0_21] : memref<1x8x128xf32, #tpu.memory_space<vmem>>, vector<1x8x128xf32>
    %34 = vector.broadcast %23 : vector<1x8x1xf32> to vector<1x8x128xf32>
    %35 = arith.mulf %34, %33 : vector<1x8x128xf32>
    %36 = arith.truncf %26 : vector<1x8x16xf32> to vector<1x8x16xbf16>
    %c0_22 = arith.constant 0 : index
    %c0_23 = arith.constant 0 : index
    %c0_24 = arith.constant 0 : index
    %37 = vector.load %arg5[%c0_22, %c0_23, %c0_24] : memref<1x16x128xf32, #tpu.memory_space<vmem>>, vector<1x16x128xf32>
    %38 = arith.truncf %37 : vector<1x16x128xf32> to vector<1x16x128xbf16>
    "tpu.trace_start"() <{level = 10 : i32, message = "bqk,bkd->bqd"}> : () -> ()
    %cst_25 = arith.constant dense<0.000000e+00> : vector<1x8x128xf32>
    %39 = tpu.matmul %36, %38, %cst_25 {dimension_numbers = #tpu.dot_dimension_numbers<[2], [1], [1], [2], [0, 0, 0, 1, 1, 2], [0], [0]>} : vector<1x8x16xbf16>, vector<1x16x128xbf16>, vector<1x8x128xf32> -> vector<1x8x128xf32>
    "tpu.trace_stop"() : () -> ()
    %40 = arith.addf %35, %39 : vector<1x8x128xf32>
    %c0_26 = arith.constant 0 : index
    %c0_27 = arith.constant 0 : index
    %c0_28 = arith.constant 0 : index
    %41 = vector.load %arg9[%c0_26, %c0_27, %c0_28] : memref<1x8x128xf32, #tpu.memory_space<vmem>>, vector<1x8x128xf32>
    tpu.vector_store %arg9[%c0_26, %c0_27, %c0_28], %40 {strides = array<i32>} : memref<1x8x128xf32, #tpu.memory_space<vmem>>, vector<1x8x128xf32>,
    %c0_29 = arith.constant 0 : index
    %c0_30 = arith.constant 0 : index
    %c0_31 = arith.constant 0 : index
    %42 = vector.load %arg7[%c0_29, %c0_30, %c0_31] : memref<1x8x1xf32, #tpu.memory_space<vmem>>, vector<1x8x1xf32>
    tpu.vector_store %arg7[%c0_29, %c0_30, %c0_31], %21 {strides = array<i32>} : memref<1x8x1xf32, #tpu.memory_space<vmem>>, vector<1x8x1xf32>,
    %c0_i32_32 = arith.constant 0 : i32
    %43 = arith.cmpi eq, %arg2, %c0_i32_32 : i32
    %44 = arith.extui %43 : i1 to i32
    %c0_i32_33 = arith.constant 0 : i32
    %45 = arith.cmpi ne, %44, %c0_i32_33 : i32
    scf.if %45 {
      %c0_34 = arith.constant 0 : index
      %c0_35 = arith.constant 0 : index
      %c0_36 = arith.constant 0 : index
      %46 = vector.load %arg9[%c0_34, %c0_35, %c0_36] : memref<1x8x128xf32, #tpu.memory_space<vmem>>, vector<1x8x128xf32>
      %c0_37 = arith.constant 0 : index
      %c0_38 = arith.constant 0 : index
      %c0_39 = arith.constant 0 : index
      %47 = vector.load %arg8[%c0_37, %c0_38, %c0_39] : memref<1x8x1xf32, #tpu.memory_space<vmem>>, vector<1x8x1xf32>
      %48 = vector.broadcast %47 : vector<1x8x1xf32> to vector<1x8x128xf32>
      %49 = arith.divf %46, %48 : vector<1x8x128xf32>
      %c0_40 = arith.constant 0 : index
      %c0_41 = arith.constant 0 : index
      %c0_42 = arith.constant 0 : index
      %50 = vector.load %arg6[%c0_40, %c0_41, %c0_42] : memref<1x8x128xf32, #tpu.memory_space<vmem>>, vector<1x8x128xf32>
      tpu.vector_store %arg6[%c0_40, %c0_41, %c0_42], %49 {strides = array<i32>} : memref<1x8x128xf32, #tpu.memory_space<vmem>>, vector<1x8x128xf32>,
    } else {
    }
    return
  }
  func.func @transform_0(%arg0: i32, %arg1: i32, %arg2: i32) -> (i32, i32, i32) {
    %c0_i32 = arith.constant 0 : i32
    %c0_i32_0 = arith.constant 0 : i32
    return %arg0, %arg1, %c0_i32 : i32, i32, i32
  }
  func.func @transform_1(%arg0: i32, %arg1: i32, %arg2: i32) -> (i32, i32, i32) {
    %c0_i32 = arith.constant 0 : i32
    %c0_i32_0 = arith.constant 0 : i32
    return %arg0, %arg2, %c0_i32 : i32, i32, i32
  }
  func.func @transform_2(%arg0: i32, %arg1: i32, %arg2: i32) -> (i32, i32, i32) {
    %c0_i32 = arith.constant 0 : i32
    %c0_i32_0 = arith.constant 0 : i32
    return %arg0, %arg2, %c0_i32 : i32, i32, i32
  }
  func.func @transform_3(%arg0: i32, %arg1: i32, %arg2: i32) -> (i32, i32, i32) {
    %c0_i32 = arith.constant 0 : i32
    %c0_i32_0 = arith.constant 0 : i32
    return %arg0, %arg1, %c0_i32 : i32, i32, i32
  }
}

</mosaic_0001>

<llo_original>
// kernel: tpu_custom_call.1
$region0: #{tpu_custom_call.1}
  #allocation0 [shape = 'u32[]', space=smem, size = 0x4, offset = 0x4, fixed_abs, tag = 'smem constant byte address 0x4 - core index']
  #allocation1 [shape = 'u32[144,128]{1,0:T(1,128)}', space=vmem, size = 0x12000, scoped, tag = 'internal scratch']
  #allocation2 [shape = 'f32[1,8,1]{2,1,0:T(8,128)}', space=vmem, size = 0x1000, scoped, tag = 'scratch operand']
  #allocation3 [shape = 'f32[1,8,1]{2,1,0:T(8,128)}', space=vmem, size = 0x1000, scoped, tag = 'scratch operand']
  #allocation4 [shape = 'f32[1,8,128]{2,1,0:T(8,128)}', space=vmem, size = 0x1000, scoped, tag = 'scratch operand']
  %s0 = inlined_call_operand.hbm [shape: f32[1,8,128], index: 0, kind: input, shape index: {}]
  %s1 = inlined_call_operand.hbm [shape: f32[1,16,128], index: 1, kind: input, shape index: {}]
  %s2 = inlined_call_operand.hbm [shape: f32[1,16,128], index: 2, kind: input, shape index: {}]
  %s3 = inlined_call_operand.hbm [shape: f32[1,8,128], index: 3, kind: output, shape index: {}]
  %s4 = sld [smem:[#allocation0]]
  $region42: #{tpu_custom_call.1} parent=0
    _
  %s6 = ssub.s32 1, %s4
  %s7 = scalar_select 0, %s6, %s4
  $region1: #{tpu_custom_call.1} parent=0
    #allocation5 [shape = 'u8[4096]{0}', space=vmem, size = 0x1000, scoped, tag = 'input window, operand 0, single buffered']
    #allocation6 [shape = 's32[1]{0}', space=sflag, size = 0x4, scoped, tag = 'scoped memory for tpu_custom_call.1']
    #allocation7 [shape = 's32[1]{0}', space=sflag, size = 0x4, scoped, tag = 'scoped memory for tpu_custom_call.1']
    #allocation8 [shape = 'u8[8192]{0}', space=vmem, size = 0x2000, scoped, tag = 'input window, operand 1, single buffered']
    #allocation9 [shape = 's32[1]{0}', space=sflag, size = 0x4, scoped, tag = 'scoped memory for tpu_custom_call.1']
    #allocation10 [shape = 'u8[8192]{0}', space=vmem, size = 0x2000, scoped, tag = 'input window, operand 2, single buffered']
    #allocation11 [shape = 'u8[4096]{0}', space=vmem, size = 0x1000, scoped, tag = 'output window, operand 0, single buffered']
    %8 = vsyncpa [#allocation6], 0
    %9 = vsyncpa [#allocation9], 0
    %10 = vsyncpa [#allocation7], 0
    // Predicated region
    $region2: #{tpu_custom_call.1} parent=1 // pred_check
      _
    $region3: #{tpu_custom_call.1} parent=1 // pred_check_branch
      %12 = sbr.rel (0) target = $region5
    $region4: #{tpu_custom_call.1} parent=1 // pred_region
      %s14 = ssub.s32 128, 128
      %15 = vsyncadd [#allocation6], %s14
      %s17 = sshll.u32 [#allocation5], 4
      %s18 = int_to_ptr.vmem [resolvable:$true] %s17
      %20 = dma.hbm_to_vmem [thread:$0]  %s0, 128, %s18, [#allocation6]
    $region5: #{tpu_custom_call.1} parent=1 // pred_fallthru
      _
    // Predicated region
    $region6: #{tpu_custom_call.1} parent=1 // pred_check
      _
    $region7: #{tpu_custom_call.1} parent=1 // pred_check_branch
      %22 = sbr.rel (0) target = $region9
    $region8: #{tpu_custom_call.1} parent=1 // pred_region
      %s24 = ssub.s32 256, 256
      %25 = vsyncadd [#allocation9], %s24
      %s26 = sshll.u32 [#allocation8], 4
      %s27 = int_to_ptr.vmem [resolvable:$true] %s26
      %32 = dma.hbm_to_vmem [thread:$0]  %s1, 256, %s27, [#allocation9], 128, 128, 8
    $region9: #{tpu_custom_call.1} parent=1 // pred_fallthru
      _
    // Predicated region
    $region10: #{tpu_custom_call.1} parent=1 // pred_check
      _
    $region11: #{tpu_custom_call.1} parent=1 // pred_check_branch
      %34 = sbr.rel (0) target = $region13
    $region12: #{tpu_custom_call.1} parent=1 // pred_region
      %s36 = ssub.s32 256, 256
      %37 = vsyncadd [#allocation9], %s36
      %s38 = sshll.u32 [#allocation10], 4
      %s39 = int_to_ptr.vmem [resolvable:$true] %s38
      %44 = dma.hbm_to_vmem [thread:$0]  %s2, 256, %s39, [#allocation9], 128, 128, 8
    $region13: #{tpu_custom_call.1} parent=1 // pred_fallthru
      _
    // Predicated region
    $region14: #{tpu_custom_call.1} parent=1 // pred_check
      _
    $region15: #{tpu_custom_call.1} parent=1 // pred_check_branch
      %46 = sbr.rel (0) target = $region17
    $region16: #{tpu_custom_call.1} parent=1 // pred_region
      %47 = dma.done [#allocation6], 128
    $region17: #{tpu_custom_call.1} parent=1 // pred_fallthru
      _
    // Predicated region
    $region18: #{tpu_custom_call.1} parent=1 // pred_check
      _
    $region19: #{tpu_custom_call.1} parent=1 // pred_check_branch
      %49 = sbr.rel (0) target = $region21
    $region20: #{tpu_custom_call.1} parent=1 // pred_region
      %50 = dma.done [#allocation9], 256
    $region21: #{tpu_custom_call.1} parent=1 // pred_fallthru
      _
    // Predicated region
    $region22: #{tpu_custom_call.1} parent=1 // pred_check
      _
    $region23: #{tpu_custom_call.1} parent=1 // pred_check_branch
      %52 = sbr.rel (0) target = $region25
    $region24: #{tpu_custom_call.1} parent=1 // pred_region
      %53 = dma.done [#allocation9], 256
    $region25: #{tpu_custom_call.1} parent=1 // pred_fallthru
      _
    %p55 = scmp.eq.s32.totalorder 0, 0
    // Predicated region
    $region26: #{tpu_custom_call.1} parent=1 // pred_check
      %p56 = pneg %p55
    $region27: #{tpu_custom_call.1} parent=1 // pred_check_branch
      %58 = sbr.rel (%p56) target = $region29
    $region28: #{tpu_custom_call.1} parent=1 // pred_region
      %vm59 = vcmask 7168
      %60 = vst.msk [vmem:[#allocation2] sm:$0xff] %vm59, -1e+30
      %61 = vst.msk [vmem:[#allocation3] sm:$0xff] %vm59, 0.0
      %62 = vst [vmem:[#allocation4] sm:$0xff] 0.0
    $region29: #{tpu_custom_call.1} parent=1 // pred_fallthru
      _
    %v63 = vld [vmem:[#allocation5] sm:$0xff]
    %v64 = vpack.c.bf16 %v63, %v63
    %v65 = vld [vmem:[#allocation8] sm:$0xff]
    %v66 = vld [vmem:[#allocation8 + $0x8] sm:$0xff]
    %v67 = vpack.c.bf16 %v66, %v65
    %68 = vmatprep.subr.bf16.mxu0 0
    %69 = vmatpush1.bf16.xpose.msra.mxu0 %v67
    %70 = vmatprep.subr.bf16.mxu0 0
    %71 = vmatpush1.bf16.xpose.msra.mxu0 0
    %72 = vmatprep.subr.bf16.mxu0 0
    %73 = vmatpush1.bf16.xpose.msra.mxu0 0
    %74 = vmatprep.subr.bf16.mxu0 0
    %75 = vmatpush1.bf16.xpose.msra.mxu0 0
    %76 = vmatprep.subr.bf16.mxu0 0
    %77 = vmatpush1.bf16.xpose.msra.mxu0 0
    %78 = vmatprep.subr.bf16.mxu0 0
    %79 = vmatpush1.bf16.xpose.msra.mxu0 0
    %80 = vmatprep.subr.bf16.mxu0 0
    %81 = vmatpush1.bf16.xpose.msra.mxu0 0
    %82 = vmatprep.subr.bf16.mxu0 0
    %83 = vmatpush1.bf16.xpose.msra.mxu0 0
    %84 = vmatprep.subr.bf16.mxu0 0
    %85 = vmatpush1.bf16.xpose.msra.mxu0 0
    %86 = vmatprep.subr.bf16.mxu0 0
    %87 = vmatpush1.bf16.xpose.msra.mxu0 0
    %88 = vmatprep.subr.bf16.mxu0 0
    %89 = vmatpush1.bf16.xpose.msra.mxu0 0
    %90 = vmatprep.subr.bf16.mxu0 0
    %91 = vmatpush1.bf16.xpose.msra.mxu0 0
    %92 = vmatprep.subr.bf16.mxu0 0
    %93 = vmatpush1.bf16.xpose.msra.mxu0 0
    %94 = vmatprep.subr.bf16.mxu0 0
    %95 = vmatpush1.bf16.xpose.msra.mxu0 0
    %96 = vmatprep.subr.bf16.mxu0 0
    %97 = vmatpush1.bf16.xpose.msra.mxu0 0
    %98 = vmatprep.subr.bf16.mxu0 0
    %99 = vmatpush1.bf16.xpose.msra.mxu0 0
    %100 = vmatprep.mubr.bf16.mxu0 0
    %101 = vmatmul.mubr.bf16.gmra.mrb[0].mxu0 %v64
    %v102 = vpop.f32.mrb[0].mxu0
    %v103 = vadd.f32 0.0, %v102
    %v104 = vpop.f32.mrb[0].mxu0
    %v105 = vpop.f32.mrb[0].mxu0
    %v106 = vpop.f32.mrb[0].mxu0
    %107 = vdwg.mxu0
    %v108 = vmul.f32 %v103, 0.125
    %s109 = smul.u32 0, 16
    %v110 = vlaneseq
    %v111 = vand.u32 %v110, 127
    %v112 = vstv %s109
    %v113 = vadd.s32 %v112, %v111
    %vm114 = vcmp.lt.s32.totalorder %v113, 10
    %v115 = vsel %vm114, %v108, -1e+30
    %v116 = vld [vmem:[#allocation2] sm:$0xff]
    %vm117 = vcmask 130048
    %v118 = vsel %vm117, %v115, -inf
    %119 = vmax.xlane.f32.xlu0 %v118
    %v120 = vpop.xlane.xlu0 %119
    %v121 = vmax.f32 %v116, %v120
    %v122 = vsub.f32 %v116, %v121
    %v123 = vmul.f32 %v122, 1.442695
    %v124 = vpow.pop %v123
    %126 = vset.pattern.permute.xlu0 0
    %127 = vperm.xlu0 %126, %v121
    %v128 = vpop.permute.xlu0 %127
    %v130 = vsub.f32 %v115, %v128
    %v131 = vmul.f32 %v130, 1.442695
    %v132 = vpow.pop %v131
    %v133 = vld [vmem:[#allocation3] sm:$0xff]
    %v134 = vmul.f32 %v124, %v133
    %v135 = vsel %vm117, %v132, 0.0
    %136 = vadd.xlane.f32.xlu0 %v135
    %v137 = vpop.xlane.xlu0 %136
    %v138 = vadd.f32 %v134, %v137
    %vm139 = vcmask 7168
    %140 = vst.msk [vmem:[#allocation3] sm:$0xff] %vm139, %v138
    %v141 = vld [vmem:[#allocation4] sm:$0xff]
    %143 = vset.pattern.permute.xlu0 0
    %144 = vperm.xlu0 %143, %v124
    %v145 = vpop.permute.xlu0 %144
    %v147 = vmul.f32 %v145, %v141
    %v148 = vpack.c.bf16 %v132, %v132
    %v149 = vld [vmem:[#allocation10] sm:$0xff]
    %v150 = vld [vmem:[#allocation10 + $0x8] sm:$0xff]
    %v151 = vpack.c.bf16 %v150, %v149
    %v153 = vsel %vm117, %v148, 0
    %155 = vmatprep.subr.bf16.mxu0 0
    %156 = vmatpush1.bf16.msra.mxu0 %v151
    %157 = vmatprep.subr.bf16.mxu0 0
    %158 = vmatpush1.bf16.msra.mxu0 0
    %159 = vmatprep.subr.bf16.mxu0 0
    %160 = vmatpush1.bf16.msra.mxu0 0
    %161 = vmatprep.subr.bf16.mxu0 0
    %162 = vmatpush1.bf16.msra.mxu0 0
    %163 = vmatprep.subr.bf16.mxu0 0
    %164 = vmatpush1.bf16.msra.mxu0 0
    %165 = vmatprep.subr.bf16.mxu0 0
    %166 = vmatpush1.bf16.msra.mxu0 0
    %167 = vmatprep.subr.bf16.mxu0 0
    %168 = vmatpush1.bf16.msra.mxu0 0
    %169 = vmatprep.subr.bf16.mxu0 0
    %170 = vmatpush1.bf16.msra.mxu0 0
    %171 = vmatprep.subr.bf16.mxu0 0
    %172 = vmatpush1.bf16.msra.mxu0 0
    %173 = vmatprep.subr.bf16.mxu0 0
    %174 = vmatpush1.bf16.msra.mxu0 0
    %175 = vmatprep.subr.bf16.mxu0 0
    %176 = vmatpush1.bf16.msra.mxu0 0
    %177 = vmatprep.subr.bf16.mxu0 0
    %178 = vmatpush1.bf16.msra.mxu0 0
    %179 = vmatprep.subr.bf16.mxu0 0
    %180 = vmatpush1.bf16.msra.mxu0 0
    %181 = vmatprep.subr.bf16.mxu0 0
    %182 = vmatpush1.bf16.msra.mxu0 0
    %183 = vmatprep.subr.bf16.mxu0 0
    %184 = vmatpush1.bf16.msra.mxu0 0
    %185 = vmatprep.subr.bf16.mxu0 0
    %186 = vmatpush1.bf16.msra.mxu0 0
    %187 = vmatprep.mubr.bf16.mxu0 0
    %188 = vmatmul.mubr.bf16.gmra.mrb[0].mxu0 %v153
    %v189 = vpop.f32.mrb[0].mxu0
    %v190 = vadd.f32 0.0, %v189
    %v191 = vpop.f32.mrb[0].mxu0
    %v192 = vpop.f32.mrb[0].mxu0
    %v193 = vpop.f32.mrb[0].mxu0
    %194 = vdwg.mxu0
    %v195 = vadd.f32 %v147, %v190
    %196 = vst [vmem:[#allocation4] sm:$0xff] %v195
    %197 = vst.msk [vmem:[#allocation2] sm:$0xff] %vm139, %v121
    // Predicated region
    $region30: #{tpu_custom_call.1} parent=1 // pred_check
      %p198 = pneg %p55
    $region31: #{tpu_custom_call.1} parent=1 // pred_check_branch
      %200 = sbr.rel (%p198) target = $region33
    $region32: #{tpu_custom_call.1} parent=1 // pred_region
      %v201 = vld [vmem:[#allocation4] sm:$0xff]
      %v202 = vld [vmem:[#allocation3] sm:$0xff]
      %204 = vset.pattern.permute.xlu0 0
      %205 = vperm.xlu0 %204, %v202
      %v206 = vpop.permute.xlu0 %205
      %v208 = vrcp.pop %v206
      %v209 = vmul.f32 %v201, %v208
      %210 = vst [vmem:[#allocation11] sm:$0xff] %v209
    $region33: #{tpu_custom_call.1} parent=1 // pred_fallthru
      _
    // Predicated region
    $region34: #{tpu_custom_call.1} parent=1 // pred_check
      _
    $region35: #{tpu_custom_call.1} parent=1 // pred_check_branch
      %212 = sbr.rel (0) target = $region37
    $region36: #{tpu_custom_call.1} parent=1 // pred_region
      %s214 = ssub.s32 128, 128
      %215 = vsyncadd [#allocation7], %s214
      %s217 = sshll.u32 [#allocation11], 4
      %s218 = int_to_ptr.vmem [resolvable:$true] %s217
      %220 = dma.vmem_to_hbm [thread:$0]  %s218, 128, %s3, [#allocation7]
    $region37: #{tpu_custom_call.1} parent=1 // pred_fallthru
      _
    // Predicated region
    $region38: #{tpu_custom_call.1} parent=1 // pred_check
      _
    $region39: #{tpu_custom_call.1} parent=1 // pred_check_branch
      %222 = sbr.rel (0) target = $region41
    $region40: #{tpu_custom_call.1} parent=1 // pred_region
      %223 = dma.done [#allocation7], 128
    $region41: #{tpu_custom_call.1} parent=1 // pred_fallthru
      _
    %224 = vsyncpa [#allocation6], 1
    %225 = vsyncpa [#allocation9], 1
    %226 = vsyncpa [#allocation7], 1

</llo_original>
